<compile_context>
chip_gen: v5e
topology: v5e:2x2
jax: 0.10.0
libtpu: 0.0.40
codegen_flags: <defaults>
</compile_context>

<pallas_src>
import math
import jax
import jax.numpy as jnp
from jax import lax
from jax.experimental import pallas as pl
from jax.experimental.pallas import tpu as pltpu


def _pick_tile(total, candidates):
    """Largest candidate that evenly divides `total`, else the full extent."""
    for c in candidates:
        if total % c == 0:
            return c
    return total


def _make_arc_kernel(s, cos_m, sin_m, th, mm, easy_margin, class_tile):
    def arc_kernel(x_ref, wt_ref, lab_ref, out_ref, cos_ref):
        # x tile: (TB, D) in input dtype; wt tile: (D, TC) bf16, pre-normalized.
        x = x_ref[...].astype(jnp.float32)
        lab = lab_ref[...]                                   # (TB, 1) int32

        # F.normalize(input, dim=1): rsqrt (EUP) + multiply instead of sqrt+divide.
        eps = jnp.float32(1e-12)
        sumsq = jnp.sum(x * x, axis=-1, keepdims=True)
        rnorm = lax.rsqrt(jnp.maximum(sumsq, eps * eps))     # 1 / max(||x||, eps)
        xn = (x * rnorm).astype(wt_ref.dtype)                # bf16 operand for MXU

        # cosine = normalize(x) @ normalize(W).T  -> (TB, TC), f32 accumulation.
        cosine = jnp.dot(xn, wt_ref[...], preferred_element_type=jnp.float32)

        # ArcFace margin math (f32, on the small (TB, TC) result).
        sine = jnp.sqrt(jnp.clip(1.0 - cosine * cosine, 0.0, 1.0))
        phi = cosine * jnp.float32(cos_m) - sine * jnp.float32(sin_m)
        if easy_margin:
            phi = jnp.where(cosine > 0.0, phi, cosine)
        else:
            phi = jnp.where(cosine > jnp.float32(th), phi, cosine - jnp.float32(mm))

        # Select the margin value only on the label column (no float one_hot).
        tb, tc = cosine.shape
        base = pl.program_id(1) * class_tile
        class_ids = base + lax.broadcasted_iota(jnp.int32, (tb, tc), 1)
        is_target = class_ids == lab                          # (TB,1) broadcasts
        output = jnp.where(is_target, phi, cosine) * jnp.float32(s)

        out_ref[...] = output.astype(out_ref.dtype)
        cos_ref[...] = cosine.astype(cos_ref.dtype)

    return arc_kernel


class ArcMarginProductPallas:
    def __init__(self, in_features, out_features, s=64.0, m=0.5, easy_margin=False,
                 *, key=None, compute_dtype=jnp.bfloat16):
        self.in_features = in_features
        self.out_features = out_features
        self.s = s
        self.m = m
        self.easy_margin = easy_margin
        self.cos_m = math.cos(m)
        self.sin_m = math.sin(m)
        self.th = math.cos(math.pi - m)
        self.mm = math.sin(math.pi - m) * m
        self.compute_dtype = compute_dtype

        # Deterministic Xavier-uniform init (out_features, in_features), like PyTorch.
        if key is None:
            key = jax.random.PRNGKey(0)
        bound = math.sqrt(6.0 / (in_features + out_features))
        self.weight = jax.random.uniform(
            key, (out_features, in_features), jnp.float32, -bound, bound)

        # Hoisted once: row-normalize in f32, transpose to (D, C), cast to bf16.
        wnorm = jnp.maximum(
            jnp.sqrt(jnp.sum(self.weight * self.weight, axis=1, keepdims=True)), 1e-12)
        self.weight_t_normed = (self.weight / wnorm).T.astype(compute_dtype)  # (D, C)

    def __call__(self, x, label):
        B, D = x.shape
        C = self.out_features
        assert D == self.in_features
        lab = label.reshape(B, 1).astype(jnp.int32)

        # Tile sizes: batch tile multiple of 8 (or full), class tile multiple of
        # 128 and sized so bf16 weight tiles double-buffer comfortably in VMEM
        # (also on v7x's 64 MiB VMEM).
        TB = _pick_tile(B, (128, 64, 32, 16, 8))
        TC = _pick_tile(C, (1024, 512, 256, 128))
        grid = (B // TB, C // TC)

        kernel = _make_arc_kernel(self.s, self.cos_m, self.sin_m,
                                  self.th, self.mm, self.easy_margin, TC)

        out, cosine = pl.pallas_call(
            kernel,
            out_shape=(
                jax.ShapeDtypeStruct((B, C), jnp.float32),
                jax.ShapeDtypeStruct((B, C), jnp.float32),
            ),
            grid=grid,
            in_specs=[
                pl.BlockSpec((TB, D), lambda i, j: (i, 0)),   # x tile
                pl.BlockSpec((D, TC), lambda i, j: (0, j)),   # pre-normalized W^T tile
                pl.BlockSpec((TB, 1), lambda i, j: (i, 0)),   # labels
            ],
            out_specs=(
                pl.BlockSpec((TB, TC), lambda i, j: (i, j)),
                pl.BlockSpec((TB, TC), lambda i, j: (i, j)),
            ),
            compiler_params=pltpu.CompilerParams(
                dimension_semantics=("parallel", "parallel")),
        )(x, self.weight_t_normed, lab)
        return out, cosine


def _reference(x, w, label, s, cos_m, sin_m, th, mm, easy_margin):
    # Pure-JAX f32 reference mirroring the PyTorch module.
    eps = 1e-12
    xn = x / jnp.maximum(jnp.linalg.norm(x, axis=1, keepdims=True), eps)
    wn = w / jnp.maximum(jnp.linalg.norm(w, axis=1, keepdims=True), eps)
    cosine = xn @ wn.T
    sine = jnp.sqrt(jnp.clip(1.0 - cosine ** 2, 0.0, 1.0))
    phi = cosine * cos_m - sine * sin_m
    if easy_margin:
        phi = jnp.where(cosine > 0, phi, cosine)
    else:
        phi = jnp.where(cosine > th, phi, cosine - mm)
    one_hot = jax.nn.one_hot(label, cosine.shape[1], dtype=jnp.float32)
    out = (one_hot * phi + (1.0 - one_hot) * cosine) * s
    return out, cosine


if __name__ == "__main__":
    B, in_features, out_features = 8, 32, 128

    key = jax.random.PRNGKey(0)
    kx, kl, kw = jax.random.split(key, 3)
    x = jax.random.normal(kx, (B, in_features), jnp.float32)
    label = jax.random.randint(kl, (B,), 0, out_features, jnp.int32)

    module = ArcMarginProductPallas(in_features, out_features, key=kw)

    out, cosine = module(x, label)
    out = jax.block_until_ready(out)
    cosine = jax.block_until_ready(cosine)

    ref_out, ref_cos = _reference(x, module.weight, label, module.s, module.cos_m,
                                  module.sin_m, module.th, module.mm,
                                  module.easy_margin)
    # Tolerances account for the bf16 MXU operands (f32 accumulation).
    cos_err = float(jnp.max(jnp.abs(cosine - ref_cos)))
    out_err = float(jnp.max(jnp.abs(out - ref_out)))
    assert cos_err < 1e-2, f"cosine max abs err {cos_err}"
    assert out_err < 0.7, f"output max abs err {out_err}"

    print("KERNEL_OK")
</pallas_src>

<mosaic_0001>
module attributes {stable_mosaic.version = 11 : i64} {
  func.func @arc_kernel(%arg0: i32, %arg1: i32, %arg2: memref<8x32xf32, #tpu.memory_space<vmem>>, %arg3: memref<32x128xbf16, #tpu.memory_space<vmem>>, %arg4: memref<8x1xi32, #tpu.memory_space<vmem>>, %arg5: memref<8x128xf32, #tpu.memory_space<vmem>>, %arg6: memref<8x128xf32, #tpu.memory_space<vmem>>) attributes {dimension_semantics = [#tpu.dimension_semantics<parallel>, #tpu.dimension_semantics<parallel>], iteration_bounds = array<i64: 1, 1>, scalar_prefetch = 0 : i64, scratch_operands = 0 : i64, tpu.core_type = #tpu.core_type<tc>, window_params = [{transform_indices = @transform_0, window_bounds = array<i64: 8, 32>}, {transform_indices = @transform_1, window_bounds = array<i64: 32, 128>}, {transform_indices = @transform_2, window_bounds = array<i64: 8, 1>}, {transform_indices = @transform_3, window_bounds = array<i64: 8, 128>}, {transform_indices = @transform_4, window_bounds = array<i64: 8, 128>}]} {
    %c0 = arith.constant 0 : index
    %c0_0 = arith.constant 0 : index
    %0 = vector.load %arg2[%c0, %c0_0] : memref<8x32xf32, #tpu.memory_space<vmem>>, vector<8x32xf32>
    %c0_1 = arith.constant 0 : index
    %c0_2 = arith.constant 0 : index
    %1 = vector.load %arg4[%c0_1, %c0_2] : memref<8x1xi32, #tpu.memory_space<vmem>>, vector<8x1xi32>
    %2 = arith.mulf %0, %0 : vector<8x32xf32>
    %cst = arith.constant dense<0.000000e+00> : vector<8xf32>
    %3 = vector.multi_reduction <add>, %2, %cst [1] : vector<8x32xf32> to vector<8xf32>
    %4 = vector.shape_cast %3 : vector<8xf32> to vector<8x1xf32>
    %cst_3 = arith.constant 9.99999996E-13 : f32
    %cst_4 = arith.constant 9.99999996E-13 : f32
    %5 = arith.mulf %cst_3, %cst_4 : f32
    %6 = vector.broadcast %5 : f32 to vector<8x1xf32>
    %7 = arith.maximumf %4, %6 : vector<8x1xf32>
    %8 = math.rsqrt %7 : vector<8x1xf32>
    %9 = vector.broadcast %8 : vector<8x1xf32> to vector<8x32xf32>
    %10 = arith.mulf %0, %9 : vector<8x32xf32>
    %11 = arith.truncf %10 : vector<8x32xf32> to vector<8x32xbf16>
    %c0_5 = arith.constant 0 : index
    %c0_6 = arith.constant 0 : index
    %12 = vector.load %arg3[%c0_5, %c0_6] : memref<32x128xbf16, #tpu.memory_space<vmem>>, vector<32x128xbf16>
    %cst_7 = arith.constant dense<0.000000e+00> : vector<8x128xf32>
    %13 = tpu.matmul %11, %12, %cst_7 {dimension_numbers = #tpu.dot_dimension_numbers<[1], [0], [0], [1], [0, 0, 1, 1], [], []>} : vector<8x32xbf16>, vector<32x128xbf16>, vector<8x128xf32> -> vector<8x128xf32>
    %14 = arith.mulf %13, %13 : vector<8x128xf32>
    %cst_8 = arith.constant 1.000000e+00 : f32
    %15 = vector.broadcast %cst_8 : f32 to vector<8x128xf32>
    %16 = arith.subf %15, %14 : vector<8x128xf32>
    %cst_9 = arith.constant 0.000000e+00 : f32
    %cst_10 = arith.constant 1.000000e+00 : f32
    %17 = vector.broadcast %cst_9 : f32 to vector<8x128xf32>
    %18 = arith.maximumf %17, %16 : vector<8x128xf32>
    %19 = vector.broadcast %cst_10 : f32 to vector<8x128xf32>
    %20 = arith.minimumf %19, %18 : vector<8x128xf32>
    %21 = math.sqrt %20 : vector<8x128xf32>
    %cst_11 = arith.constant 0.87758255 : f32
    %22 = vector.broadcast %cst_11 : f32 to vector<8x128xf32>
    %23 = arith.mulf %13, %22 : vector<8x128xf32>
    %cst_12 = arith.constant 0.47942555 : f32
    %24 = vector.broadcast %cst_12 : f32 to vector<8x128xf32>
    %25 = arith.mulf %21, %24 : vector<8x128xf32>
    %26 = arith.subf %23, %25 : vector<8x128xf32>
    %cst_13 = arith.constant -0.87758255 : f32
    %27 = vector.broadcast %cst_13 : f32 to vector<8x128xf32>
    %28 = arith.cmpf ogt, %13, %27 : vector<8x128xf32>
    %cst_14 = arith.constant 0.239712775 : f32
    %29 = vector.broadcast %cst_14 : f32 to vector<8x128xf32>
    %30 = arith.subf %13, %29 : vector<8x128xf32>
    %31 = arith.select %28, %26, %30 : vector<8x128xi1>, vector<8x128xf32>
    %c128_i32 = arith.constant 128 : i32
    %32 = arith.muli %arg1, %c128_i32 : i32
    %33 = tpu.iota {dimensions = array<i32: 1>} : vector<8x128xi32>
    %34 = vector.broadcast %32 : i32 to vector<8x128xi32>
    %35 = arith.addi %34, %33 : vector<8x128xi32>
    %36 = vector.broadcast %1 : vector<8x1xi32> to vector<8x128xi32>
    %37 = arith.cmpi eq, %35, %36 : vector<8x128xi32>
    %38 = arith.select %37, %31, %13 : vector<8x128xi1>, vector<8x128xf32>
    %cst_15 = arith.constant 6.400000e+01 : f32
    %39 = vector.broadcast %cst_15 : f32 to vector<8x128xf32>
    %40 = arith.mulf %38, %39 : vector<8x128xf32>
    %c0_16 = arith.constant 0 : index
    %c0_17 = arith.constant 0 : index
    %41 = vector.load %arg5[%c0_16, %c0_17] : memref<8x128xf32, #tpu.memory_space<vmem>>, vector<8x128xf32>
    tpu.vector_store %arg5[%c0_16, %c0_17], %40 {strides = array<i32>} : memref<8x128xf32, #tpu.memory_space<vmem>>, vector<8x128xf32>,
    %c0_18 = arith.constant 0 : index
    %c0_19 = arith.constant 0 : index
    %42 = vector.load %arg6[%c0_18, %c0_19] : memref<8x128xf32, #tpu.memory_space<vmem>>, vector<8x128xf32>
    tpu.vector_store %arg6[%c0_18, %c0_19], %13 {strides = array<i32>} : memref<8x128xf32, #tpu.memory_space<vmem>>, vector<8x128xf32>,
    return
  }
  func.func @transform_0(%arg0: i32, %arg1: i32) -> (i32, i32) {
    %c0_i32 = arith.constant 0 : i32
    %c0_i32_0 = arith.constant 0 : i32
    return %arg0, %c0_i32 : i32, i32
  }
  func.func @transform_1(%arg0: i32, %arg1: i32) -> (i32, i32) {
    %c0_i32 = arith.constant 0 : i32
    %c0_i32_0 = arith.constant 0 : i32
    return %c0_i32, %arg1 : i32, i32
  }
  func.func @transform_2(%arg0: i32, %arg1: i32) -> (i32, i32) {
    %c0_i32 = arith.constant 0 : i32
    %c0_i32_0 = arith.constant 0 : i32
    return %arg0, %c0_i32 : i32, i32
  }
  func.func @transform_3(%arg0: i32, %arg1: i32) -> (i32, i32) {
    %c0_i32 = arith.constant 0 : i32
    return %arg0, %arg1 : i32, i32
  }
  func.func @transform_4(%arg0: i32, %arg1: i32) -> (i32, i32) {
    %c0_i32 = arith.constant 0 : i32
    return %arg0, %arg1 : i32, i32
  }
}

</mosaic_0001>

<llo_original>
// kernel: tpu_custom_call.1
$region0: #{tpu_custom_call.1}
  #allocation0 [shape = 'u32[]', space=smem, size = 0x4, offset = 0x4, fixed_abs, tag = 'smem constant byte address 0x4 - core index']
  #allocation1 [shape = 'u32[72,128]{1,0:T(1,128)}', space=vmem, size = 0x9000, scoped, tag = 'internal scratch']
  %s0 = inlined_call_operand.vmem [shape: f32[8,32], index: 0, kind: input, shape index: {}]
  %s1 = inlined_call_operand.hbm [shape: bf16[32,128], index: 1, kind: input, shape index: {}]
  %s2 = inlined_call_operand.vmem [shape: s32[8,1], index: 2, kind: input, shape index: {}]
  %s3 = inlined_call_operand.hbm [shape: f32[8,128], index: 3, kind: output, shape index: {0}]
  %s4 = inlined_call_operand.hbm [shape: f32[8,128], index: 4, kind: output, shape index: {1}]
  %5 = xla_tuple %s3, %s4
  %s6 = sld [smem:[#allocation0]]
  $region34: #{tpu_custom_call.1} parent=0
    _
  %s8 = ssub.s32 1, %s6
  %s9 = scalar_select 0, %s8, %s6
  $region1: #{tpu_custom_call.1} parent=0
    #allocation2 [shape = 'u8[8192]{0}', space=vmem, size = 0x2000, scoped, tag = 'input window, operand 1, single buffered']
    #allocation3 [shape = 's32[1]{0}', space=sflag, size = 0x4, scoped, tag = 'scoped memory for tpu_custom_call.1']
    #allocation4 [shape = 's32[1]{0}', space=sflag, size = 0x4, scoped, tag = 'scoped memory for tpu_custom_call.1']
    #allocation5 [shape = 'u8[4096]{0}', space=vmem, size = 0x1000, scoped, tag = 'output window, operand 0, single buffered']
    #allocation6 [shape = 'u8[4096]{0}', space=vmem, size = 0x1000, scoped, tag = 'output window, operand 1, single buffered']
    #allocation7 [shape = 's32[1]{0}', space=sflag, size = 0x4, scoped, tag = 'scoped memory for tpu_custom_call.1']
    %10 = vsyncpa [#allocation3], 0
    %11 = vsyncpa [#allocation4], 0
    %12 = vsyncpa [#allocation7], 0
    // Predicated region
    $region2: #{tpu_custom_call.1} parent=1 // pred_check
      _
    $region3: #{tpu_custom_call.1} parent=1 // pred_check_branch
      %14 = sbr.rel (0) target = $region5
    $region4: #{tpu_custom_call.1} parent=1 // pred_region
      _
    $region5: #{tpu_custom_call.1} parent=1 // pred_fallthru
      _
    // Predicated region
    $region6: #{tpu_custom_call.1} parent=1 // pred_check
      _
    $region7: #{tpu_custom_call.1} parent=1 // pred_check_branch
      %16 = sbr.rel (0) target = $region9
    $region8: #{tpu_custom_call.1} parent=1 // pred_region
      %18 = vsyncadd [#allocation3], 0
      %s19 = sshll.u32 %s1, 4
      %s20 = int_to_ptr.hbm [resolvable:$true] %s19
      %s21 = sshll.u32 [#allocation2], 4
      %s22 = int_to_ptr.vmem [resolvable:$true] %s21
      %27 = dma.hbm_to_vmem [thread:$0]  %s20, 256, %s22, [#allocation3], 64, 64, 4
    $region9: #{tpu_custom_call.1} parent=1 // pred_fallthru
      _
    // Predicated region
    $region10: #{tpu_custom_call.1} parent=1 // pred_check
      _
    $region11: #{tpu_custom_call.1} parent=1 // pred_check_branch
      %29 = sbr.rel (0) target = $region13
    $region12: #{tpu_custom_call.1} parent=1 // pred_region
      _
    $region13: #{tpu_custom_call.1} parent=1 // pred_fallthru
      _
    // Predicated region
    $region14: #{tpu_custom_call.1} parent=1 // pred_check
      _
    $region15: #{tpu_custom_call.1} parent=1 // pred_check_branch
      %31 = sbr.rel (0) target = $region17
    $region16: #{tpu_custom_call.1} parent=1 // pred_region
      %33 = dma.done [#allocation3], 256
    $region17: #{tpu_custom_call.1} parent=1 // pred_fallthru
      _
    %v35 = vld [vmem:[%s0] sm:$0xff]
    %v36 = vld [vmem:[%s2] sm:$0xff]
    %v37 = vmul.f32 %v35, %v35
    %vm38 = vcmask 261120
    %v39 = vsel %vm38, %v37, 0.0
    %40 = vadd.xlane.f32.xlu0 %v39
    %v41 = vpop.xlane.xlu0 %40
    %v42 = vmax.f32 %v41, 1e-24
    %v43 = vrsqrt.pop %v42
    %v44 = vmul.f32 %v43, %v42
    %v45 = vmul.f32 %v44, %v43
    %v46 = vmul.f32 0.5, %v45
    %v47 = vsub.f32 1.5, %v46
    %v48 = vmul.f32 %v43, %v47
    %vm49 = vweird.f32 %v42
    %vm50 = vweird.f32 %v43
    %vm51 = vmor %vm49, %vm50
    %v52 = vsel %vm51, %v43, %v48
    %v53 = vmul.f32 %v35, %v52
    %v54 = vpack.c.bf16 %v53, %v53
    %v55 = vld [vmem:[#allocation2] sm:$0xf]
    %v56 = vld [vmem:[#allocation2 + $0x4] sm:$0xf]
    %v57 = vld [vmem:[#allocation2 + $0x8] sm:$0xf]
    %v58 = vld [vmem:[#allocation2 + $0xc] sm:$0xf]
    %v63 = vunpack.c.l.b16 %v55
    %v64 = vunpack.c.l.b16 %v56
    %v65 = vunpack.c.l.b16 %v57
    %v66 = vunpack.c.l.b16 %v58
    %v67 = vpack.c.b16 %v64, %v63
    %v68 = vpack.c.b16 %v66, %v65
    %v72 = vsel %vm38, %v54, 0
    %74 = vmatpush.bf16.msra.mxu0 0
    %75 = vmatpush.bf16.msra.mxu0 0
    %76 = vmatpush.bf16.msra.mxu0 0
    %77 = vmatpush.bf16.msra.mxu0 0
    %78 = vmatpush.bf16.msra.mxu0 0
    %79 = vmatpush.bf16.msra.mxu0 0
    %80 = vmatpush.bf16.msra.mxu0 %v68
    %81 = vmatpush.bf16.msra.mxu0 %v67
    %82 = vmatmul.bf16.gmra.mxu0 %v72
    %v83 = vpop.f32.mrf.mxu0
    %v84 = vadd.f32 0.0, %v83
    %v85 = vpop.f32.mrf.mxu0
    %86 = vdwg.mxu0
    %v87 = vmul.f32 %v84, %v84
    %v88 = vsub.f32 1.0, %v87
    %v89 = vmax.f32 %v88, 0.0
    %v90 = vmin.f32 %v89, 1.0
    %v91 = vrsqrt.pop %v90
    %v92 = vmul.f32 %v91, %v90
    %v93 = vmul.f32 %v92, %v91
    %v94 = vmul.f32 0.5, %v93
    %v95 = vsub.f32 1.5, %v94
    %v96 = vmul.f32 %v91, %v95
    %v97 = vmul.f32 %v90, %v96
    %vm98 = vcmp.eq.f32.partialorder %v90, inf
    %v99 = vsel %vm98, %v90, %v97
    %vm100 = vcmp.eq.f32.partialorder %v90, 0.0
    %v101 = vand.u32 %v90, 2147483648
    %v102 = vsel %vm100, %v101, %v99
    %v103 = vmul.f32 %v84, 0.87758255
    %v104 = vmul.f32 %v102, 0.47942555
    %v105 = vsub.f32 %v103, %v104
    %vm106 = vcmp.gt.f32.partialorder %v84, -0.87758255
    %v107 = vsub.f32 %v84, 0.23971277
    %v108 = vsel %vm106, %v105, %v107
    %s109 = smul.u32 0, 128
    %v110 = vlaneseq
    %v111 = vand.u32 %v110, 127
    %v112 = vstv %s109
    %v113 = vadd.s32 %v112, %v111
    %114 = vset.pattern.permute.xlu0 0
    %115 = vperm.xlu0 %114, %v36
    %v116 = vpop.permute.xlu0 %115
    %vm117 = vcmp.eq.s32.totalorder %v113, %v116
    %v118 = vsel %vm117, %v108, %v84
    %v119 = vmul.f32 %v118, 64.0
    %120 = vst [vmem:[#allocation5] sm:$0xff] %v119
    %121 = vst [vmem:[#allocation6] sm:$0xff] %v84
    // Predicated region
    $region18: #{tpu_custom_call.1} parent=1 // pred_check
      _
    $region19: #{tpu_custom_call.1} parent=1 // pred_check_branch
      %123 = sbr.rel (0) target = $region21
    $region20: #{tpu_custom_call.1} parent=1 // pred_region
      %125 = vsyncadd [#allocation4], 0
      %s127 = sshll.u32 [#allocation5], 4
      %s128 = int_to_ptr.vmem [resolvable:$true] %s127
      %s129 = sshll.u32 %s3, 4
      %s130 = int_to_ptr.hbm [resolvable:$true] %s129
      %132 = dma.vmem_to_hbm [thread:$0]  %s128, 128, %s130, [#allocation4]
    $region21: #{tpu_custom_call.1} parent=1 // pred_fallthru
      _
    // Predicated region
    $region22: #{tpu_custom_call.1} parent=1 // pred_check
      _
    $region23: #{tpu_custom_call.1} parent=1 // pred_check_branch
      %134 = sbr.rel (0) target = $region25
    $region24: #{tpu_custom_call.1} parent=1 // pred_region
      %136 = vsyncadd [#allocation7], 0
      %s138 = sshll.u32 [#allocation6], 4
      %s139 = int_to_ptr.vmem [resolvable:$true] %s138
      %s140 = sshll.u32 %s4, 4
      %s141 = int_to_ptr.hbm [resolvable:$true] %s140
      %143 = dma.vmem_to_hbm [thread:$0]  %s139, 128, %s141, [#allocation7]
    $region25: #{tpu_custom_call.1} parent=1 // pred_fallthru
      _
    // Predicated region
    $region26: #{tpu_custom_call.1} parent=1 // pred_check
      _
    $region27: #{tpu_custom_call.1} parent=1 // pred_check_branch
      %145 = sbr.rel (0) target = $region29
    $region28: #{tpu_custom_call.1} parent=1 // pred_region
      %147 = dma.done [#allocation4], 128
    $region29: #{tpu_custom_call.1} parent=1 // pred_fallthru
      _
    // Predicated region
    $region30: #{tpu_custom_call.1} parent=1 // pred_check
      _
    $region31: #{tpu_custom_call.1} parent=1 // pred_check_branch
      %149 = sbr.rel (0) target = $region33
    $region32: #{tpu_custom_call.1} parent=1 // pred_region
      %151 = dma.done [#allocation7], 128
    $region33: #{tpu_custom_call.1} parent=1 // pred_fallthru
      _
    %152 = vsyncpa [#allocation3], 1
    %153 = vsyncpa [#allocation4], 1
    %154 = vsyncpa [#allocation7], 1

</llo_original>
